<compile_context>
chip_gen: v6e
topology: v6e:2x2x1
jax: 0.10.0
libtpu: 0.0.40
codegen_flags: <defaults>
</compile_context>

<pallas_src>
import jax
import jax.numpy as jnp
from jax.experimental import pallas as pl
from jax.experimental.pallas import tpu as pltpu


# ----------------------------- config / shapes ------------------------------
B = 2            # batch size
LQ = 8           # query sequence length
LC = 8           # candidate term length
WE = 32          # word_emb_size
QE = 16          # q_embed_size
KSIZE = 3        # conv kernel_size
VOCAB = 50
ENT = 10
EMB_SIZE = VOCAB + ENT   # use_knowledge=True
SAMPLE = 3       # sample_size (topN)
OUT_LEN = LQ - KSIZE + 1
NIDX = B * (LQ + LC)     # all indices (query + candidate) in one column


# --------------------------------- kernel ------------------------------------
def knowledge_agent_kernel(emb_ref, idx_ref, cterm_ref,
                           convw_ref, convb_ref, w1_ref, b1_ref, w2_ref,
                           probs_ref, sel_ref, expand_ref, ent_ref):
    # emb_ref:   (EMB_SIZE, WE)        idx_ref:  (NIDX, 1) int32  [query | cand]
    # cterm_ref: (B, LC) int32
    # convw_ref: (KSIZE*WE, QE)        convb_ref: (1, QE)
    # w1_ref:    (QE+WE, QE)           b1_ref: (1, QE)       w2_ref: (1, QE)
    # probs_ref: (B, LC)   sel_ref: (B, SAMPLE)   expand_ref: (B, SAMPLE) int32
    # ent_ref:   (B, 1)
    emb = emb_ref[...]                                            # (E, WE)

    # ---- fused embedding lookup: ONE one-hot matmul for query + cand indices
    oh = (jax.lax.broadcasted_iota(jnp.int32, (NIDX, EMB_SIZE), 1)
          == idx_ref[...]).astype(jnp.float32)                    # (NIDX, E)
    all_emb = jnp.dot(oh, emb, preferred_element_type=jnp.float32)  # (NIDX, WE)
    q_emb = all_emb[:B * LQ]                                      # (B*LQ, WE)
    c_emb = all_emb[B * LQ:]                                      # (B*LC, WE)

    cand_term = cterm_ref[...]                                    # (B, LC) int32
    mask = 1.0 - (cand_term == 0).astype(jnp.float32)             # (B, LC)

    # ---- CNN1D query encoder: im2col via static slices -> single MXU matmul
    q3 = q_emb.reshape(B, LQ, WE)                                 # tile-aligned split
    taps = [q3]
    for t in range(1, KSIZE):                                     # circular shift by t
        taps.append(jnp.concatenate([q3[:, t:, :], q3[:, :t, :]], axis=1))
    cols = jnp.concatenate(taps, axis=-1)                         # (B, LQ, KSIZE*WE)
    conv = jnp.dot(cols.reshape(B * LQ, KSIZE * WE), convw_ref[...],
                   preferred_element_type=jnp.float32)            # (B*LQ, QE)
    conv = jnp.maximum(conv + convb_ref[...], 0.0)                # bias + ReLU
    conv3 = conv.reshape(B, LQ, QE)
    # wrapped positions (l >= OUT_LEN) are invalid "valid-conv" outputs -> mask
    valid = jax.lax.broadcasted_iota(jnp.int32, (B, LQ, QE), 1) < OUT_LEN
    query_embed = jnp.max(jnp.where(valid, conv3, -1.0), axis=1)  # (B, QE)

    # ---- per-candidate MLP score, split: [q | c] @ W1 == q@W1[:QE] + c@W1[QE:]
    w1 = w1_ref[...]                                              # (QE+WE, QE)
    hq = jnp.dot(query_embed, w1[:QE],
                 preferred_element_type=jnp.float32)              # (B, QE)
    hc = jnp.dot(c_emb, w1[QE:],
                 preferred_element_type=jnp.float32)              # (B*LC, QE)
    h = jnp.tanh(hq[:, None, :] + hc.reshape(B, LC, QE)
                 + b1_ref[...][None])                             # (B, LC, QE)
    scores = jnp.sum(h * w2_ref[...][None], axis=2)               # (B, LC)

    # ---- softmax over candidates (dim=1), then mask (torch order), entropy
    m = jnp.max(scores, axis=1, keepdims=True)
    e = jnp.exp(scores - m)
    denom = jnp.sum(e, axis=1, keepdims=True)
    probs = e * pl.reciprocal(denom, approx=True)
    probs = probs * mask
    probs_ref[...] = probs
    plogp = jnp.where(probs > 0.0, probs * jnp.log(probs), 0.0)   # guard 0*log(0)
    ent_ref[...] = -jnp.sum(plogp, axis=1, keepdims=True)

    # ---- eval-mode sample_action: top-k (SAMPLE) + gather of candidate ids
    pos_iota = jax.lax.broadcasted_iota(jnp.int32, (B, LC), 1)
    p_work = probs
    sel_cols, exp_cols = [], []
    for _ in range(SAMPLE):
        m_s = jnp.max(p_work, axis=1, keepdims=True)              # (B, 1)
        a = jnp.min(jnp.where(p_work == m_s, pos_iota, LC),
                    axis=1, keepdims=True)                        # first argmax (B,1)
        hit = pos_iota == a                                       # (B, LC)
        sel_cols.append(m_s)
        exp_cols.append(jnp.sum(jnp.where(hit, cand_term, 0),
                                axis=1, keepdims=True))           # gathered id (B,1)
        p_work = jnp.where(hit, -1.0, p_work)                     # remove selected
    sel_ref[...] = jnp.concatenate(sel_cols, axis=1)              # (B, SAMPLE)
    expand_ref[...] = jnp.concatenate(exp_cols, axis=1)           # (B, SAMPLE) int32


# -------------------------------- wrapper -------------------------------------
def knowledge_agent_forward(params, query_ent_idx, cand_term):
    """Eval-mode forward: returns (cand_probs, select_probs, expand_idx, entropy)."""
    vmem = pl.BlockSpec(memory_space=pltpu.MemorySpace.VMEM)
    # One sublane-oriented int32 index column for both gathers (query | cand).
    idx_all = jnp.concatenate(
        [query_ent_idx.reshape(B * LQ), cand_term.reshape(B * LC)]
    ).reshape(NIDX, 1)
    cand_probs, select_probs, expand_idx, entropy = pl.pallas_call(
        knowledge_agent_kernel,
        out_shape=(
            jax.ShapeDtypeStruct((B, LC), jnp.float32),
            jax.ShapeDtypeStruct((B, SAMPLE), jnp.float32),
            jax.ShapeDtypeStruct((B, SAMPLE), jnp.int32),
            jax.ShapeDtypeStruct((B, 1), jnp.float32),
        ),
        in_specs=[vmem] * 8,
        out_specs=(vmem, vmem, vmem, vmem),
    )(
        params["emb"],
        idx_all,
        cand_term,
        params["conv_w"].reshape(KSIZE * WE, QE),
        params["conv_b"],
        params["w1"],
        params["b1"],
        params["w2"],
    )
    return cand_probs, select_probs, expand_idx, entropy[:, 0]


# --------------------------- pure-JAX reference ------------------------------
def reference_forward(params, query_ent_idx, cand_term):
    emb = params["emb"]
    q_emb = emb[query_ent_idx]
    cand_emb = emb[cand_term]
    mask = 1.0 - (cand_term == 0).astype(jnp.float32)
    acc = jnp.zeros((B, OUT_LEN, QE), jnp.float32)
    for t in range(KSIZE):
        acc = acc + jnp.einsum('blw,wq->blq', q_emb[:, t:t + OUT_LEN, :],
                               params["conv_w"][t])
    acc = jax.nn.relu(acc + params["conv_b"][None])
    query_embed = jnp.max(acc, axis=1)
    w1q, w1c = params["w1"][:QE], params["w1"][QE:]
    h = jnp.tanh(jnp.einsum('bq,qh->bh', query_embed, w1q)[:, None, :]
                 + jnp.einsum('bcw,wh->bch', cand_emb, w1c)
                 + params["b1"][None])
    scores = jnp.sum(h * params["w2"][None], axis=-1)
    probs = jax.nn.softmax(scores, axis=1) * mask
    ent = -jnp.sum(probs * jnp.log(probs), axis=1)
    sp, act = jax.lax.top_k(probs, SAMPLE)
    exp_idx = jnp.take_along_axis(cand_term, act, axis=1)
    return probs, sp, exp_idx, ent


# ----------------------------------- main ------------------------------------
if __name__ == "__main__":
    key = jax.random.PRNGKey(0)
    k_emb, k_cw, k_w1, k_w2, k_qidx, k_cidx = jax.random.split(key, 6)

    # Deterministic parameter init (synthetic; no checkpoint loading).
    emb_table = jax.random.normal(k_emb, (EMB_SIZE, WE), jnp.float32) * 0.1
    conv_w = (jax.random.normal(k_cw, (KSIZE, WE, QE), jnp.float32)
              * (1.0 / jnp.sqrt(float(WE * KSIZE))))
    conv_b = jnp.zeros((1, QE), jnp.float32)
    # ind_output_layer[0]: Linear(QE+WE -> QE), xavier_uniform, zero bias.
    # concat order is [query_embed (QE), cand_term_emb (WE)].
    bound1 = (6.0 / float(QE + WE + QE)) ** 0.5
    w1 = jax.random.uniform(k_w1, (QE + WE, QE), jnp.float32,
                            minval=-bound1, maxval=bound1)
    b1 = jnp.zeros((1, QE), jnp.float32)
    # ind_output_layer[2]: Linear(QE -> 1, bias=False), xavier_uniform.
    bound2 = (6.0 / float(QE + 1)) ** 0.5
    w2 = jax.random.uniform(k_w2, (1, QE), jnp.float32, minval=-bound2, maxval=bound2)

    params = dict(emb=emb_table, conv_w=conv_w, conv_b=conv_b,
                  w1=w1, b1=b1, w2=w2)

    # Example inputs.  Candidate ids kept nonzero (index 0 = pad would make the
    # torch-equivalent reference entropy 0*log(0) = nan; the kernel itself guards).
    query_ent_idx = jax.random.randint(k_qidx, (B, LQ), 1, EMB_SIZE, jnp.int32)
    cand_term = jax.random.randint(k_cidx, (B, LC), 1, VOCAB, jnp.int32)

    forward = jax.jit(knowledge_agent_forward)
    outs = jax.block_until_ready(forward(params, query_ent_idx, cand_term))
    cand_probs, select_probs, expand_idx, entropy = outs

    ref = reference_forward(params, query_ent_idx, cand_term)
    # Tolerances account for pl.reciprocal(approx=True) in the softmax divide
    # (per-row constant scale, so top-k ordering / expand_idx are still exact).
    assert jnp.allclose(cand_probs, ref[0], atol=5e-3), "cand_probs mismatch"
    assert jnp.allclose(select_probs, ref[1], atol=5e-3), "select_probs mismatch"
    assert jnp.array_equal(expand_idx, ref[2]), "expand_idx mismatch"
    assert jnp.allclose(entropy, ref[3], atol=5e-2), "entropy mismatch"

    print("KERNEL_OK")
</pallas_src>

<mosaic_0001>
module attributes {stable_mosaic.version = 11 : i64} {
  func.func @knowledge_agent_kernel(%arg0: memref<60x32xf32, #tpu.memory_space<vmem>>, %arg1: memref<32x1xi32, #tpu.memory_space<vmem>>, %arg2: memref<2x8xi32, #tpu.memory_space<vmem>>, %arg3: memref<96x16xf32, #tpu.memory_space<vmem>>, %arg4: memref<1x16xf32, #tpu.memory_space<vmem>>, %arg5: memref<48x16xf32, #tpu.memory_space<vmem>>, %arg6: memref<1x16xf32, #tpu.memory_space<vmem>>, %arg7: memref<1x16xf32, #tpu.memory_space<vmem>>, %arg8: memref<2x8xf32, #tpu.memory_space<vmem>>, %arg9: memref<2x3xf32, #tpu.memory_space<vmem>>, %arg10: memref<2x3xi32, #tpu.memory_space<vmem>>, %arg11: memref<2x1xf32, #tpu.memory_space<vmem>>) attributes {dimension_semantics = [], scalar_prefetch = 0 : i64, scratch_operands = 0 : i64, tpu.core_type = #tpu.core_type<tc>} {
    %c0 = arith.constant 0 : index
    %c0_0 = arith.constant 0 : index
    %0 = vector.load %arg0[%c0, %c0_0] : memref<60x32xf32, #tpu.memory_space<vmem>>, vector<60x32xf32>
    %1 = tpu.iota {dimensions = array<i32: 1>} : vector<32x60xi32>
    %c0_1 = arith.constant 0 : index
    %c0_2 = arith.constant 0 : index
    %2 = vector.load %arg1[%c0_1, %c0_2] : memref<32x1xi32, #tpu.memory_space<vmem>>, vector<32x1xi32>
    %3 = vector.broadcast %2 : vector<32x1xi32> to vector<32x60xi32>
    %4 = arith.cmpi eq, %1, %3 : vector<32x60xi32>
    %5 = arith.extui %4 : vector<32x60xi1> to vector<32x60xi32>
    %6 = arith.sitofp %5 : vector<32x60xi32> to vector<32x60xf32>
    %cst = arith.constant dense<0.000000e+00> : vector<32x32xf32>
    %7 = tpu.matmul %6, %0, %cst {dimension_numbers = #tpu.dot_dimension_numbers<[1], [0], [0], [1], [0, 0, 1, 1], [], []>} : vector<32x60xf32>, vector<60x32xf32>, vector<32x32xf32> -> vector<32x32xf32>
    %8 = vector.extract_strided_slice %7 {offsets = [0, 0], sizes = [16, 32], strides = [1, 1]} : vector<32x32xf32> to vector<16x32xf32>
    %9 = vector.extract_strided_slice %7 {offsets = [16, 0], sizes = [16, 32], strides = [1, 1]} : vector<32x32xf32> to vector<16x32xf32>
    %c0_3 = arith.constant 0 : index
    %c0_4 = arith.constant 0 : index
    %10 = vector.load %arg2[%c0_3, %c0_4] : memref<2x8xi32, #tpu.memory_space<vmem>>, vector<2x8xi32>
    %c0_i32 = arith.constant 0 : i32
    %11 = vector.broadcast %c0_i32 : i32 to vector<2x8xi32>
    %12 = arith.cmpi eq, %10, %11 : vector<2x8xi32>
    %13 = arith.extui %12 : vector<2x8xi1> to vector<2x8xi32>
    %14 = arith.sitofp %13 : vector<2x8xi32> to vector<2x8xf32>
    %cst_5 = arith.constant 1.000000e+00 : f32
    %15 = vector.broadcast %cst_5 : f32 to vector<2x8xf32>
    %16 = arith.subf %15, %14 : vector<2x8xf32>
    %17 = vector.shape_cast %8 : vector<16x32xf32> to vector<2x8x32xf32>
    %18 = vector.extract_strided_slice %17 {offsets = [0, 1, 0], sizes = [2, 7, 32], strides = [1, 1, 1]} : vector<2x8x32xf32> to vector<2x7x32xf32>
    %19 = vector.extract_strided_slice %17 {offsets = [0, 0, 0], sizes = [2, 1, 32], strides = [1, 1, 1]} : vector<2x8x32xf32> to vector<2x1x32xf32>
    %20 = tpu.concatenate %18, %19 in 1 : vector<2x7x32xf32>, vector<2x1x32xf32> -> vector<2x8x32xf32>
    %21 = vector.extract_strided_slice %17 {offsets = [0, 2, 0], sizes = [2, 6, 32], strides = [1, 1, 1]} : vector<2x8x32xf32> to vector<2x6x32xf32>
    %22 = vector.extract_strided_slice %17 {offsets = [0, 0, 0], sizes = [2, 2, 32], strides = [1, 1, 1]} : vector<2x8x32xf32> to vector<2x2x32xf32>
    %23 = tpu.concatenate %21, %22 in 1 : vector<2x6x32xf32>, vector<2x2x32xf32> -> vector<2x8x32xf32>
    %24 = tpu.concatenate %17, %20, %23 in 2 : vector<2x8x32xf32>, vector<2x8x32xf32>, vector<2x8x32xf32> -> vector<2x8x96xf32>
    %25 = vector.shape_cast %24 : vector<2x8x96xf32> to vector<16x96xf32>
    %c0_6 = arith.constant 0 : index
    %c0_7 = arith.constant 0 : index
    %26 = vector.load %arg3[%c0_6, %c0_7] : memref<96x16xf32, #tpu.memory_space<vmem>>, vector<96x16xf32>
    %cst_8 = arith.constant dense<0.000000e+00> : vector<16x16xf32>
    %27 = tpu.matmul %25, %26, %cst_8 {dimension_numbers = #tpu.dot_dimension_numbers<[1], [0], [0], [1], [0, 0, 1, 1], [], []>} : vector<16x96xf32>, vector<96x16xf32>, vector<16x16xf32> -> vector<16x16xf32>
    %c0_9 = arith.constant 0 : index
    %c0_10 = arith.constant 0 : index
    %28 = vector.load %arg4[%c0_9, %c0_10] : memref<1x16xf32, #tpu.memory_space<vmem>>, vector<1x16xf32>
    %29 = vector.broadcast %28 : vector<1x16xf32> to vector<16x16xf32>
    %30 = arith.addf %27, %29 : vector<16x16xf32>
    %cst_11 = arith.constant 0.000000e+00 : f32
    %31 = vector.broadcast %cst_11 : f32 to vector<16x16xf32>
    %32 = arith.maximumf %30, %31 : vector<16x16xf32>
    %33 = vector.shape_cast %32 : vector<16x16xf32> to vector<2x8x16xf32>
    %34 = tpu.iota {dimensions = array<i32: 1>} : vector<2x8x16xi32>
    %c6_i32 = arith.constant 6 : i32
    %35 = vector.broadcast %c6_i32 : i32 to vector<2x8x16xi32>
    %36 = arith.cmpi slt, %34, %35 : vector<2x8x16xi32>
    %cst_12 = arith.constant -1.000000e+00 : f32
    %37 = vector.broadcast %cst_12 : f32 to vector<2x8x16xf32>
    %38 = arith.select %36, %33, %37 : vector<2x8x16xi1>, vector<2x8x16xf32>
    %cst_13 = arith.constant dense<0xFF800000> : vector<2x16xf32>
    %39 = vector.multi_reduction <maximumf>, %38, %cst_13 [1] : vector<2x8x16xf32> to vector<2x16xf32>
    %c0_14 = arith.constant 0 : index
    %c0_15 = arith.constant 0 : index
    %40 = vector.load %arg5[%c0_14, %c0_15] : memref<48x16xf32, #tpu.memory_space<vmem>>, vector<48x16xf32>
    %41 = vector.extract_strided_slice %40 {offsets = [0, 0], sizes = [16, 16], strides = [1, 1]} : vector<48x16xf32> to vector<16x16xf32>
    %cst_16 = arith.constant dense<0.000000e+00> : vector<2x16xf32>
    %42 = tpu.matmul %39, %41, %cst_16 {dimension_numbers = #tpu.dot_dimension_numbers<[1], [0], [0], [1], [0, 0, 1, 1], [], []>} : vector<2x16xf32>, vector<16x16xf32>, vector<2x16xf32> -> vector<2x16xf32>
    %43 = vector.extract_strided_slice %40 {offsets = [16, 0], sizes = [32, 16], strides = [1, 1]} : vector<48x16xf32> to vector<32x16xf32>
    %cst_17 = arith.constant dense<0.000000e+00> : vector<16x16xf32>
    %44 = tpu.matmul %9, %43, %cst_17 {dimension_numbers = #tpu.dot_dimension_numbers<[1], [0], [0], [1], [0, 0, 1, 1], [], []>} : vector<16x32xf32>, vector<32x16xf32>, vector<16x16xf32> -> vector<16x16xf32>
    %45 = vector.shape_cast %42 : vector<2x16xf32> to vector<2x1x16xf32>
    %46 = vector.shape_cast %44 : vector<16x16xf32> to vector<2x8x16xf32>
    %47 = vector.broadcast %45 : vector<2x1x16xf32> to vector<2x8x16xf32>
    %48 = arith.addf %47, %46 : vector<2x8x16xf32>
    %c0_18 = arith.constant 0 : index
    %c0_19 = arith.constant 0 : index
    %49 = vector.load %arg6[%c0_18, %c0_19] : memref<1x16xf32, #tpu.memory_space<vmem>>, vector<1x16xf32>
    %50 = vector.shape_cast %49 : vector<1x16xf32> to vector<1x1x16xf32>
    %51 = vector.broadcast %50 : vector<1x1x16xf32> to vector<2x8x16xf32>
    %52 = arith.addf %48, %51 : vector<2x8x16xf32>
    %53 = math.tanh %52 : vector<2x8x16xf32>
    %c0_20 = arith.constant 0 : index
    %c0_21 = arith.constant 0 : index
    %54 = vector.load %arg7[%c0_20, %c0_21] : memref<1x16xf32, #tpu.memory_space<vmem>>, vector<1x16xf32>
    %55 = vector.shape_cast %54 : vector<1x16xf32> to vector<1x1x16xf32>
    %56 = vector.broadcast %55 : vector<1x1x16xf32> to vector<2x8x16xf32>
    %57 = arith.mulf %53, %56 : vector<2x8x16xf32>
    %cst_22 = arith.constant dense<0.000000e+00> : vector<2x8xf32>
    %58 = vector.multi_reduction <add>, %57, %cst_22 [2] : vector<2x8x16xf32> to vector<2x8xf32>
    %cst_23 = arith.constant dense<0xFF800000> : vector<2xf32>
    %59 = vector.multi_reduction <maximumf>, %58, %cst_23 [1] : vector<2x8xf32> to vector<2xf32>
    %60 = vector.shape_cast %59 : vector<2xf32> to vector<2x1xf32>
    %61 = vector.broadcast %60 : vector<2x1xf32> to vector<2x8xf32>
    %62 = arith.subf %58, %61 : vector<2x8xf32>
    %63 = math.exp %62 : vector<2x8xf32>
    %cst_24 = arith.constant dense<0.000000e+00> : vector<2xf32>
    %64 = vector.multi_reduction <add>, %63, %cst_24 [1] : vector<2x8xf32> to vector<2xf32>
    %65 = vector.shape_cast %64 : vector<2xf32> to vector<2x1xf32>
    %66 = tpu.reciprocal %65 {approx = true} : vector<2x1xf32> -> vector<2x1xf32>
    %67 = vector.broadcast %66 : vector<2x1xf32> to vector<2x8xf32>
    %68 = arith.mulf %63, %67 : vector<2x8xf32>
    %69 = arith.mulf %68, %16 : vector<2x8xf32>
    %c0_25 = arith.constant 0 : index
    %c0_26 = arith.constant 0 : index
    %70 = vector.load %arg8[%c0_25, %c0_26] : memref<2x8xf32, #tpu.memory_space<vmem>>, vector<2x8xf32>
    tpu.vector_store %arg8[%c0_25, %c0_26], %69 {strides = array<i32>} : memref<2x8xf32, #tpu.memory_space<vmem>>, vector<2x8xf32>,
    %cst_27 = arith.constant 0.000000e+00 : f32
    %71 = vector.broadcast %cst_27 : f32 to vector<2x8xf32>
    %72 = arith.cmpf ogt, %69, %71 : vector<2x8xf32>
    %73 = math.log %69 : vector<2x8xf32>
    %74 = arith.mulf %69, %73 : vector<2x8xf32>
    %cst_28 = arith.constant 0.000000e+00 : f32
    %75 = vector.broadcast %cst_28 : f32 to vector<2x8xf32>
    %76 = arith.select %72, %74, %75 : vector<2x8xi1>, vector<2x8xf32>
    %cst_29 = arith.constant dense<0.000000e+00> : vector<2xf32>
    %77 = vector.multi_reduction <add>, %76, %cst_29 [1] : vector<2x8xf32> to vector<2xf32>
    %78 = vector.shape_cast %77 : vector<2xf32> to vector<2x1xf32>
    %cst_30 = arith.constant 0.000000e+00 : f32
    %79 = vector.broadcast %cst_30 : f32 to vector<2x1xf32>
    %80 = arith.subf %79, %78 : vector<2x1xf32>
    %c0_31 = arith.constant 0 : index
    %c0_32 = arith.constant 0 : index
    %81 = vector.load %arg11[%c0_31, %c0_32] : memref<2x1xf32, #tpu.memory_space<vmem>>, vector<2x1xf32>
    tpu.vector_store %arg11[%c0_31, %c0_32], %80 {strides = array<i32>} : memref<2x1xf32, #tpu.memory_space<vmem>>, vector<2x1xf32>,
    %82 = tpu.iota {dimensions = array<i32: 1>} : vector<2x8xi32>
    %cst_33 = arith.constant dense<0xFF800000> : vector<2xf32>
    %83 = vector.multi_reduction <maximumf>, %69, %cst_33 [1] : vector<2x8xf32> to vector<2xf32>
    %84 = vector.shape_cast %83 : vector<2xf32> to vector<2x1xf32>
    %85 = vector.broadcast %84 : vector<2x1xf32> to vector<2x8xf32>
    %86 = arith.cmpf oeq, %69, %85 : vector<2x8xf32>
    %c8_i32 = arith.constant 8 : i32
    %87 = vector.broadcast %c8_i32 : i32 to vector<2x8xi32>
    %88 = arith.select %86, %82, %87 : vector<2x8xi1>, vector<2x8xi32>
    %cst_34 = arith.constant dense<2147483647> : vector<2xi32>
    %89 = vector.multi_reduction <minsi>, %88, %cst_34 [1] : vector<2x8xi32> to vector<2xi32>
    %90 = vector.shape_cast %89 : vector<2xi32> to vector<2x1xi32>
    %91 = vector.broadcast %90 : vector<2x1xi32> to vector<2x8xi32>
    %92 = arith.cmpi eq, %82, %91 : vector<2x8xi32>
    %c0_i32_35 = arith.constant 0 : i32
    %93 = vector.broadcast %c0_i32_35 : i32 to vector<2x8xi32>
    %94 = arith.select %92, %10, %93 : vector<2x8xi1>, vector<2x8xi32>
    %cst_36 = arith.constant dense<0> : vector<2xi32>
    %95 = vector.multi_reduction <add>, %94, %cst_36 [1] : vector<2x8xi32> to vector<2xi32>
    %96 = vector.shape_cast %95 : vector<2xi32> to vector<2x1xi32>
    %cst_37 = arith.constant -1.000000e+00 : f32
    %97 = vector.broadcast %cst_37 : f32 to vector<2x8xf32>
    %98 = arith.select %92, %97, %69 : vector<2x8xi1>, vector<2x8xf32>
    %cst_38 = arith.constant dense<0xFF800000> : vector<2xf32>
    %99 = vector.multi_reduction <maximumf>, %98, %cst_38 [1] : vector<2x8xf32> to vector<2xf32>
    %100 = vector.shape_cast %99 : vector<2xf32> to vector<2x1xf32>
    %101 = vector.broadcast %100 : vector<2x1xf32> to vector<2x8xf32>
    %102 = arith.cmpf oeq, %98, %101 : vector<2x8xf32>
    %c8_i32_39 = arith.constant 8 : i32
    %103 = vector.broadcast %c8_i32_39 : i32 to vector<2x8xi32>
    %104 = arith.select %102, %82, %103 : vector<2x8xi1>, vector<2x8xi32>
    %cst_40 = arith.constant dense<2147483647> : vector<2xi32>
    %105 = vector.multi_reduction <minsi>, %104, %cst_40 [1] : vector<2x8xi32> to vector<2xi32>
    %106 = vector.shape_cast %105 : vector<2xi32> to vector<2x1xi32>
    %107 = vector.broadcast %106 : vector<2x1xi32> to vector<2x8xi32>
    %108 = arith.cmpi eq, %82, %107 : vector<2x8xi32>
    %c0_i32_41 = arith.constant 0 : i32
    %109 = vector.broadcast %c0_i32_41 : i32 to vector<2x8xi32>
    %110 = arith.select %108, %10, %109 : vector<2x8xi1>, vector<2x8xi32>
    %cst_42 = arith.constant dense<0> : vector<2xi32>
    %111 = vector.multi_reduction <add>, %110, %cst_42 [1] : vector<2x8xi32> to vector<2xi32>
    %112 = vector.shape_cast %111 : vector<2xi32> to vector<2x1xi32>
    %cst_43 = arith.constant -1.000000e+00 : f32
    %113 = vector.broadcast %cst_43 : f32 to vector<2x8xf32>
    %114 = arith.select %108, %113, %98 : vector<2x8xi1>, vector<2x8xf32>
    %cst_44 = arith.constant dense<0xFF800000> : vector<2xf32>
    %115 = vector.multi_reduction <maximumf>, %114, %cst_44 [1] : vector<2x8xf32> to vector<2xf32>
    %116 = vector.shape_cast %115 : vector<2xf32> to vector<2x1xf32>
    %117 = vector.broadcast %116 : vector<2x1xf32> to vector<2x8xf32>
    %118 = arith.cmpf oeq, %114, %117 : vector<2x8xf32>
    %c8_i32_45 = arith.constant 8 : i32
    %119 = vector.broadcast %c8_i32_45 : i32 to vector<2x8xi32>
    %120 = arith.select %118, %82, %119 : vector<2x8xi1>, vector<2x8xi32>
    %cst_46 = arith.constant dense<2147483647> : vector<2xi32>
    %121 = vector.multi_reduction <minsi>, %120, %cst_46 [1] : vector<2x8xi32> to vector<2xi32>
    %122 = vector.shape_cast %121 : vector<2xi32> to vector<2x1xi32>
    %123 = vector.broadcast %122 : vector<2x1xi32> to vector<2x8xi32>
    %124 = arith.cmpi eq, %82, %123 : vector<2x8xi32>
    %c0_i32_47 = arith.constant 0 : i32
    %125 = vector.broadcast %c0_i32_47 : i32 to vector<2x8xi32>
    %126 = arith.select %124, %10, %125 : vector<2x8xi1>, vector<2x8xi32>
    %cst_48 = arith.constant dense<0> : vector<2xi32>
    %127 = vector.multi_reduction <add>, %126, %cst_48 [1] : vector<2x8xi32> to vector<2xi32>
    %128 = vector.shape_cast %127 : vector<2xi32> to vector<2x1xi32>
    %129 = tpu.concatenate %84, %100, %116 in 1 : vector<2x1xf32>, vector<2x1xf32>, vector<2x1xf32> -> vector<2x3xf32>
    %c0_49 = arith.constant 0 : index
    %c0_50 = arith.constant 0 : index
    %130 = vector.load %arg9[%c0_49, %c0_50] : memref<2x3xf32, #tpu.memory_space<vmem>>, vector<2x3xf32>
    tpu.vector_store %arg9[%c0_49, %c0_50], %129 {strides = array<i32>} : memref<2x3xf32, #tpu.memory_space<vmem>>, vector<2x3xf32>,
    %131 = tpu.concatenate %96, %112, %128 in 1 : vector<2x1xi32>, vector<2x1xi32>, vector<2x1xi32> -> vector<2x3xi32>
    %c0_51 = arith.constant 0 : index
    %c0_52 = arith.constant 0 : index
    %132 = vector.load %arg10[%c0_51, %c0_52] : memref<2x3xi32, #tpu.memory_space<vmem>>, vector<2x3xi32>
    tpu.vector_store %arg10[%c0_51, %c0_52], %131 {strides = array<i32>} : memref<2x3xi32, #tpu.memory_space<vmem>>, vector<2x3xi32>,
    return
  }
}

</mosaic_0001>

<llo_original>
// kernel: knowledge_agent_forward.1
$region0: #{knowledge_agent_forward.1}
  #allocation0 [shape = 'u32[]', space=smem, size = 0x4, offset = 0x4, fixed_abs, tag = 'smem constant byte address 0x4 - core index']
  #allocation1 [shape = 'u32[144,128]{1,0:T(1,128)}', space=vmem, size = 0x12000, scoped, tag = 'internal scratch']
  %s0 = inlined_call_operand.vmem [shape: f32[60,32], index: 0, kind: input, shape index: {}]
  %s1 = inlined_call_operand.vmem [shape: s32[32,1], index: 1, kind: input, shape index: {}]
  %s2 = inlined_call_operand.vmem [shape: s32[2,8], index: 2, kind: input, shape index: {}]
  %s3 = inlined_call_operand.vmem [shape: f32[96,16], index: 3, kind: input, shape index: {}]
  %s4 = inlined_call_operand.vmem [shape: f32[1,16], index: 4, kind: input, shape index: {}]
  %s5 = inlined_call_operand.vmem [shape: f32[48,16], index: 5, kind: input, shape index: {}]
  %s6 = inlined_call_operand.vmem [shape: f32[1,16], index: 6, kind: input, shape index: {}]
  %s7 = inlined_call_operand.vmem [shape: f32[1,16], index: 7, kind: input, shape index: {}]
  %s8 = inlined_call_operand.hbm [shape: f32[2,8], index: 8, kind: output, shape index: {0}]
  %s9 = inlined_call_operand.hbm [shape: f32[2,3], index: 9, kind: output, shape index: {1}]
  %s10 = inlined_call_operand.hbm [shape: s32[2,3], index: 10, kind: output, shape index: {2}]
  %s11 = inlined_call_operand.vmem [shape: f32[2,1], index: 11, kind: output, shape index: {3}]
  %12 = xla_tuple %s8, %s9, %s10, %s11
  %s13 = sld [smem:[#allocation0]]
  $region66: #{knowledge_agent_forward.1} parent=0
    _
  %s15 = ssub.s32 1, %s13
  %s16 = scalar_select 0, %s15, %s13
  $region1: #{knowledge_agent_forward.1} parent=0
    #allocation2 [shape = 'u8[1024]{0}', space=vmem, size = 0x400, scoped, tag = 'output window, operand 0, single buffered']
    #allocation3 [shape = 's32[1]{0}', space=sflag, size = 0x4, scoped, tag = 'scoped memory for knowledge_agent_forward.1']
    #allocation4 [shape = 'u8[1024]{0}', space=vmem, size = 0x400, scoped, tag = 'output window, operand 1, single buffered']
    #allocation5 [shape = 's32[1]{0}', space=sflag, size = 0x4, scoped, tag = 'scoped memory for knowledge_agent_forward.1']
    #allocation6 [shape = 'u8[1024]{0}', space=vmem, size = 0x400, scoped, tag = 'output window, operand 2, single buffered']
    %17 = vsyncpa [#allocation3], 0
    %18 = vsyncpa [#allocation5], 0
    // Predicated region
    $region2: #{knowledge_agent_forward.1} parent=1 // pred_check
      _
    $region3: #{knowledge_agent_forward.1} parent=1 // pred_check_branch
      %20 = sbr.rel (0) target = $region5
    $region4: #{knowledge_agent_forward.1} parent=1 // pred_region
      _
    $region5: #{knowledge_agent_forward.1} parent=1 // pred_fallthru
      _
    // Predicated region
    $region6: #{knowledge_agent_forward.1} parent=1 // pred_check
      _
    $region7: #{knowledge_agent_forward.1} parent=1 // pred_check_branch
      %22 = sbr.rel (0) target = $region9
    $region8: #{knowledge_agent_forward.1} parent=1 // pred_region
      _
    $region9: #{knowledge_agent_forward.1} parent=1 // pred_fallthru
      _
    // Predicated region
    $region10: #{knowledge_agent_forward.1} parent=1 // pred_check
      _
    $region11: #{knowledge_agent_forward.1} parent=1 // pred_check_branch
      %24 = sbr.rel (0) target = $region13
    $region12: #{knowledge_agent_forward.1} parent=1 // pred_region
      _
    $region13: #{knowledge_agent_forward.1} parent=1 // pred_fallthru
      _
    // Predicated region
    $region14: #{knowledge_agent_forward.1} parent=1 // pred_check
      _
    $region15: #{knowledge_agent_forward.1} parent=1 // pred_check_branch
      %26 = sbr.rel (0) target = $region17
    $region16: #{knowledge_agent_forward.1} parent=1 // pred_region
      _
    $region17: #{knowledge_agent_forward.1} parent=1 // pred_fallthru
      _
    // Predicated region
    $region18: #{knowledge_agent_forward.1} parent=1 // pred_check
      _
    $region19: #{knowledge_agent_forward.1} parent=1 // pred_check_branch
      %28 = sbr.rel (0) target = $region21
    $region20: #{knowledge_agent_forward.1} parent=1 // pred_region
      _
    $region21: #{knowledge_agent_forward.1} parent=1 // pred_fallthru
      _
    // Predicated region
    $region22: #{knowledge_agent_forward.1} parent=1 // pred_check
      _
    $region23: #{knowledge_agent_forward.1} parent=1 // pred_check_branch
      %30 = sbr.rel (0) target = $region25
    $region24: #{knowledge_agent_forward.1} parent=1 // pred_region
      _
    $region25: #{knowledge_agent_forward.1} parent=1 // pred_fallthru
      _
    // Predicated region
    $region26: #{knowledge_agent_forward.1} parent=1 // pred_check
      _
    $region27: #{knowledge_agent_forward.1} parent=1 // pred_check_branch
      %32 = sbr.rel (0) target = $region29
    $region28: #{knowledge_agent_forward.1} parent=1 // pred_region
      _
    $region29: #{knowledge_agent_forward.1} parent=1 // pred_fallthru
      _
    // Predicated region
    $region30: #{knowledge_agent_forward.1} parent=1 // pred_check
      _
    $region31: #{knowledge_agent_forward.1} parent=1 // pred_check_branch
      %34 = sbr.rel (0) target = $region33
    $region32: #{knowledge_agent_forward.1} parent=1 // pred_region
      _
    $region33: #{knowledge_agent_forward.1} parent=1 // pred_fallthru
      _
    %v35 = vld [vmem:[%s0] sm:$0xff]
    %v36 = vld [vmem:[%s0 + $0x8] sm:$0xff]
    %v37 = vld [vmem:[%s0 + $0x10] sm:$0xff]
    %v38 = vld [vmem:[%s0 + $0x18] sm:$0xff]
    %v39 = vld [vmem:[%s0 + $0x20] sm:$0xff]
    %v40 = vld [vmem:[%s0 + $0x28] sm:$0xff]
    %v41 = vld [vmem:[%s0 + $0x30] sm:$0xff]
    %v42 = vld [vmem:[%s0 + $0x38] sm:$0xf]
    %v43 = vlaneseq
    %v44 = vand.u32 %v43, 127
    %v45 = vld [vmem:[%s1] sm:$0xff]
    %v46 = vld [vmem:[%s1 + $0x8] sm:$0xff]
    %v47 = vld [vmem:[%s1 + $0x10] sm:$0xff]
    %v48 = vld [vmem:[%s1 + $0x18] sm:$0xff]
    %49 = vset.pattern.permute.xlu0 0
    %50 = vperm.xlu0 %49, %v45
    %v51 = vpop.permute.xlu0 %50
    %52 = vset.pattern.permute.xlu0 0
    %53 = vperm.xlu0 %52, %v46
    %v54 = vpop.permute.xlu0 %53
    %55 = vset.pattern.permute.xlu0 0
    %56 = vperm.xlu0 %55, %v47
    %v57 = vpop.permute.xlu0 %56
    %58 = vset.pattern.permute.xlu0 0
    %59 = vperm.xlu0 %58, %v48
    %v60 = vpop.permute.xlu0 %59
    %vm61 = vcmp.eq.s32.totalorder %v44, %v51
    %vm62 = vcmp.eq.s32.totalorder %v44, %v54
    %vm63 = vcmp.eq.s32.totalorder %v44, %v57
    %vm64 = vcmp.eq.s32.totalorder %v44, %v60
    %v65 = vsel %vm61, 1, 0
    %v66 = vsel %vm62, 1, 0
    %v67 = vsel %vm63, 1, 0
    %v68 = vsel %vm64, 1, 0
    %v69 = vcvt.s32.f32 %v65
    %v70 = vcvt.s32.f32 %v66
    %v71 = vcvt.s32.f32 %v67
    %v72 = vcvt.s32.f32 %v68
    %vm73 = vcmask 490496
    %v75 = vsel %vm73, %v69, 0
    %v78 = vsel %vm73, %v70, 0
    %v81 = vsel %vm73, %v71, 0
    %v84 = vsel %vm73, %v72, 0
    %vm86 = vcmask 1043456
    %v88 = vsel %vm86, %v42, 0
    %90 = vmatprep.subr.mxu0 0.0
    %91 = vmatpush1.msra.mxu0 0.0
    %92 = vmatprep.subr.mxu0 0.0
    %93 = vmatpush1.msra.mxu0 0.0
    %94 = vmatprep.subr.mxu0 0.0
    %95 = vmatpush1.msra.mxu0 0.0
    %96 = vmatprep.subr.mxu0 0.0
    %97 = vmatpush1.msra.mxu0 0.0
    %98 = vmatprep.subr.mxu0 0.0
    %99 = vmatpush1.msra.mxu0 0.0
    %100 = vmatprep.subr.mxu0 0.0
    %101 = vmatpush1.msra.mxu0 0.0
    %102 = vmatprep.subr.mxu0 0.0
    %103 = vmatpush1.msra.mxu0 0.0
    %104 = vmatprep.subr.mxu0 0.0
    %105 = vmatpush1.msra.mxu0 0.0
    %106 = vmatprep.subr.mxu0 0.0
    %107 = vmatpush1.msra.mxu0 %v88
    %108 = vmatprep.subr.mxu0 0.0
    %109 = vmatpush1.msra.mxu0 %v41
    %110 = vmatprep.subr.mxu0 0.0
    %111 = vmatpush1.msra.mxu0 %v40
    %112 = vmatprep.subr.mxu0 0.0
    %113 = vmatpush1.msra.mxu0 %v39
    %114 = vmatprep.subr.mxu0 0.0
    %115 = vmatpush1.msra.mxu0 %v38
    %116 = vmatprep.subr.mxu0 0.0
    %117 = vmatpush1.msra.mxu0 %v37
    %118 = vmatprep.subr.mxu0 0.0
    %119 = vmatpush1.msra.mxu0 %v36
    %120 = vmatprep.subr.mxu0 0.0
    %121 = vmatpush1.msra.mxu0 %v35
    %122 = vmatprep.subr.mxu0 0.0
    %123 = vmatpush2.msra.mxu0 0.0
    %124 = vmatprep.subr.mxu0 0.0
    %125 = vmatpush2.msra.mxu0 0.0
    %126 = vmatprep.subr.mxu0 0.0
    %127 = vmatpush2.msra.mxu0 0.0
    %128 = vmatprep.subr.mxu0 0.0
    %129 = vmatpush2.msra.mxu0 0.0
    %130 = vmatprep.subr.mxu0 0.0
    %131 = vmatpush2.msra.mxu0 0.0
    %132 = vmatprep.subr.mxu0 0.0
    %133 = vmatpush2.msra.mxu0 0.0
    %134 = vmatprep.subr.mxu0 0.0
    %135 = vmatpush2.msra.mxu0 0.0
    %136 = vmatprep.subr.mxu0 0.0
    %137 = vmatpush2.msra.mxu0 0.0
    %138 = vmatprep.subr.mxu0 0.0
    %139 = vmatpush2.msra.mxu0 0.0
    %140 = vmatprep.subr.mxu0 0.0
    %141 = vmatpush2.msra.mxu0 0.0
    %142 = vmatprep.subr.mxu0 0.0
    %143 = vmatpush2.msra.mxu0 0.0
    %144 = vmatprep.subr.mxu0 0.0
    %145 = vmatpush2.msra.mxu0 0.0
    %146 = vmatprep.subr.mxu0 0.0
    %147 = vmatpush2.msra.mxu0 0.0
    %148 = vmatprep.subr.mxu0 0.0
    %149 = vmatpush2.msra.mxu0 0.0
    %150 = vmatprep.subr.mxu0 0.0
    %151 = vmatpush2.msra.mxu0 0.0
    %152 = vmatprep.subr.mxu0 0.0
    %153 = vmatpush2.msra.mxu0 0.0
    %154 = vmatprep.mubr.f32.mxu0 0.0
    %155 = vmatmul.mubr.f32.gmra.mxu0 %v75
    %v156 = vpop.f32.mrf.mxu0
    %v157 = vadd.f32 0.0, %v156
    %v158 = vpop.f32.mrf.mxu0
    %159 = vmatprep.mubr.f32.mxu0 0.0
    %160 = vmatmul.mubr.f32.gmra.mxu0 %v78
    %v161 = vpop.f32.mrf.mxu0
    %v162 = vadd.f32 0.0, %v161
    %v163 = vpop.f32.mrf.mxu0
    %164 = vmatprep.mubr.f32.mxu0 0.0
    %165 = vmatmul.mubr.f32.gmra.mxu0 %v81
    %v166 = vpop.f32.mrf.mxu0
    %v167 = vadd.f32 0.0, %v166
    %v168 = vpop.f32.mrf.mxu0
    %169 = vmatprep.mubr.f32.mxu0 0.0
    %170 = vmatmul.mubr.f32.gmra.mxu0 %v84
    %v171 = vpop.f32.mrf.mxu0
    %v172 = vadd.f32 0.0, %v171
    %v173 = vpop.f32.mrf.mxu0
    %174 = vdwg.mxu0
    %v175 = vld [vmem:[%s2] sm:$0x3]
    %vm176 = vcmp.eq.s32.totalorder %v175, 0
    %v177 = vsel %vm176, 1, 0
    %v178 = vcvt.s32.f32 %v177
    %v179 = vsub.f32 1.0, %v178
    %v182 = vrot.slane %v157, 1
    %v183 = vrot.slane %v162, 1
    %vm186 = vcmask 1046528
    %v187 = vsel %vm186, %v182, %v182
    %v188 = vsel %vm186, %v183, %v183
    %v189 = vrot.slane %v157, 2
    %v190 = vrot.slane %v162, 2
    %vm193 = vcmask 1045504
    %v194 = vsel %vm193, %v189, %v189
    %v195 = vsel %vm193, %v190, %v190
    %198 = vrot.lane.b32.xlu0 %v187, 32
    %v199 = vpop.permute.xlu0 %198
    %200 = vrot.lane.b32.xlu0 %v188, 32
    %v201 = vpop.permute.xlu0 %200
    %206 = vrot.lane.b32.xlu0 %v194, 64
    %v207 = vpop.permute.xlu0 %206
    %208 = vrot.lane.b32.xlu0 %v195, 64
    %v209 = vpop.permute.xlu0 %208
    %vm212 = vcmask 261120
    %v213 = vsel %vm212, %v157, %v199
    %v214 = vsel %vm212, %v162, %v201
    %vm215 = vcmask 523264
    %v216 = vsel %vm215, %v213, %v207
    %v217 = vsel %vm215, %v214, %v209
    %v218 = vld [vmem:[%s3] sm:$0xff]
    %v219 = vld [vmem:[%s3 + $0x8] sm:$0xff]
    %v220 = vld [vmem:[%s3 + $0x10] sm:$0xff]
    %v221 = vld [vmem:[%s3 + $0x18] sm:$0xff]
    %v222 = vld [vmem:[%s3 + $0x20] sm:$0xff]
    %v223 = vld [vmem:[%s3 + $0x28] sm:$0xff]
    %v224 = vld [vmem:[%s3 + $0x30] sm:$0xff]
    %v225 = vld [vmem:[%s3 + $0x38] sm:$0xff]
    %v226 = vld [vmem:[%s3 + $0x40] sm:$0xff]
    %v227 = vld [vmem:[%s3 + $0x48] sm:$0xff]
    %v228 = vld [vmem:[%s3 + $0x50] sm:$0xff]
    %v229 = vld [vmem:[%s3 + $0x58] sm:$0xff]
    %v230 = vld [vmem:[%s4] sm:$0x1]
    %v232 = vlaneseq
    %v233 = vshrl.u32 %v232, 7
    %v234 = vsub.s32 0, %v233
    %v235 = vrot.slane %v230, %v234
    %vm237 = vcmask 785408
    %v239 = vsel %vm237, %v216, 0
    %v242 = vsel %vm237, %v217, 0
    %244 = vmatprep.subr.mxu0 0.0
    %245 = vmatpush1.msra.mxu0 0.0
    %246 = vmatprep.subr.mxu0 0.0
    %247 = vmatpush1.msra.mxu0 0.0
    %248 = vmatprep.subr.mxu0 0.0
    %249 = vmatpush1.msra.mxu0 0.0
    %250 = vmatprep.subr.mxu0 0.0
    %251 = vmatpush1.msra.mxu0 0.0
    %252 = vmatprep.subr.mxu0 0.0
    %253 = vmatpush1.msra.mxu0 %v229
    %254 = vmatprep.subr.mxu0 0.0
    %255 = vmatpush1.msra.mxu0 %v228
    %256 = vmatprep.subr.mxu0 0.0
    %257 = vmatpush1.msra.mxu0 %v227
    %258 = vmatprep.subr.mxu0 0.0
    %259 = vmatpush1.msra.mxu0 %v226
    %260 = vmatprep.subr.mxu0 0.0
    %261 = vmatpush1.msra.mxu0 %v225
    %262 = vmatprep.subr.mxu0 0.0
    %263 = vmatpush1.msra.mxu0 %v224
    %264 = vmatprep.subr.mxu0 0.0
    %265 = vmatpush1.msra.mxu0 %v223
    %266 = vmatprep.subr.mxu0 0.0
    %267 = vmatpush1.msra.mxu0 %v222
    %268 = vmatprep.subr.mxu0 0.0
    %269 = vmatpush1.msra.mxu0 %v221
    %270 = vmatprep.subr.mxu0 0.0
    %271 = vmatpush1.msra.mxu0 %v220
    %272 = vmatprep.subr.mxu0 0.0
    %273 = vmatpush1.msra.mxu0 %v219
    %274 = vmatprep.subr.mxu0 0.0
    %275 = vmatpush1.msra.mxu0 %v218
    %276 = vmatprep.subr.mxu0 0.0
    %277 = vmatpush2.msra.mxu0 0.0
    %278 = vmatprep.subr.mxu0 0.0
    %279 = vmatpush2.msra.mxu0 0.0
    %280 = vmatprep.subr.mxu0 0.0
    %281 = vmatpush2.msra.mxu0 0.0
    %282 = vmatprep.subr.mxu0 0.0
    %283 = vmatpush2.msra.mxu0 0.0
    %284 = vmatprep.subr.mxu0 0.0
    %285 = vmatpush2.msra.mxu0 0.0
    %286 = vmatprep.subr.mxu0 0.0
    %287 = vmatpush2.msra.mxu0 0.0
    %288 = vmatprep.subr.mxu0 0.0
    %289 = vmatpush2.msra.mxu0 0.0
    %290 = vmatprep.subr.mxu0 0.0
    %291 = vmatpush2.msra.mxu0 0.0
    %292 = vmatprep.subr.mxu0 0.0
    %293 = vmatpush2.msra.mxu0 0.0
    %294 = vmatprep.subr.mxu0 0.0
    %295 = vmatpush2.msra.mxu0 0.0
    %296 = vmatprep.subr.mxu0 0.0
    %297 = vmatpush2.msra.mxu0 0.0
    %298 = vmatprep.subr.mxu0 0.0
    %299 = vmatpush2.msra.mxu0 0.0
    %300 = vmatprep.subr.mxu0 0.0
    %301 = vmatpush2.msra.mxu0 0.0
    %302 = vmatprep.subr.mxu0 0.0
    %303 = vmatpush2.msra.mxu0 0.0
    %304 = vmatprep.subr.mxu0 0.0
    %305 = vmatpush2.msra.mxu0 0.0
    %306 = vmatprep.subr.mxu0 0.0
    %307 = vmatpush2.msra.mxu0 0.0
    %308 = vmatprep.mubr.f32.mxu0 0.0
    %309 = vmatmul.mubr.f32.gmra.mxu0 %v239
    %v310 = vpop.f32.mrf.mxu0
    %v311 = vadd.f32 %v235, %v310
    %v312 = vpop.f32.mrf.mxu0
    %313 = vmatprep.mubr.f32.mxu0 0.0
    %314 = vmatmul.mubr.f32.gmra.mxu0 %v242
    %v315 = vpop.f32.mrf.mxu0
    %v316 = vadd.f32 %v235, %v315
    %v317 = vpop.f32.mrf.mxu0
    %318 = vdwg.mxu0
    %v319 = vmax.f32 %v311, 0.0
    %v320 = vmax.f32 %v316, 0.0
    %v321 = vlaneseq
    %v322 = vshrl.u32 %v321, 7
    %vm323 = vcmp.lt.s32.totalorder %v322, 6
    %v324 = vsel %vm323, %v319, -1.0
    %v325 = vsel %vm323, %v320, -1.0
    %vm326 = vcmask 130048
    %v327 = vsel %vm326, %v324, -inf
    %v328 = vrot.slane %v327, 4
    %v329 = vmax.f32 %v327, %v328
    %v330 = vrot.slane %v329, 2
    %v331 = vmax.f32 %v329, %v330
    %v332 = vrot.slane %v331, 1
    %v333 = vmax.f32 %v331, %v332
    %v334 = vsel %vm326, %v325, -inf
    %v335 = vrot.slane %v334, 4
    %v336 = vmax.f32 %v334, %v335
    %v337 = vrot.slane %v336, 2
    %v338 = vmax.f32 %v336, %v337
    %v339 = vrot.slane %v338, 1
    %v340 = vmax.f32 %v338, %v339
    %v341 = vld [vmem:[%s5] sm:$0xff]
    %v342 = vld [vmem:[%s5 + $0x8] sm:$0xff]
    %v343 = vld [vmem:[%s5 + $0x10] sm:$0xff]
    %v344 = vld [vmem:[%s5 + $0x18] sm:$0xff]
    %v345 = vld [vmem:[%s5 + $0x20] sm:$0xff]
    %v346 = vld [vmem:[%s5 + $0x28] sm:$0xff]
    %vm349 = vcmask 1041409
    %v350 = vsel %vm349, %v340, %v333
    %v351 = vsel %vm326, %v350, 0
    %353 = vmatprep.subr.mxu0 0.0
    %354 = vmatpush1.msra.mxu0 0.0
    %355 = vmatprep.subr.mxu0 0.0
    %356 = vmatpush1.msra.mxu0 0.0
    %357 = vmatprep.subr.mxu0 0.0
    %358 = vmatpush1.msra.mxu0 0.0
    %359 = vmatprep.subr.mxu0 0.0
    %360 = vmatpush1.msra.mxu0 0.0
    %361 = vmatprep.subr.mxu0 0.0
    %362 = vmatpush1.msra.mxu0 0.0
    %363 = vmatprep.subr.mxu0 0.0
    %364 = vmatpush1.msra.mxu0 0.0
    %365 = vmatprep.subr.mxu0 0.0
    %366 = vmatpush1.msra.mxu0 0.0
    %367 = vmatprep.subr.mxu0 0.0
    %368 = vmatpush1.msra.mxu0 0.0
    %369 = vmatprep.subr.mxu0 0.0
    %370 = vmatpush1.msra.mxu0 0.0
    %371 = vmatprep.subr.mxu0 0.0
    %372 = vmatpush1.msra.mxu0 0.0
    %373 = vmatprep.subr.mxu0 0.0
    %374 = vmatpush1.msra.mxu0 0.0
    %375 = vmatprep.subr.mxu0 0.0
    %376 = vmatpush1.msra.mxu0 0.0
    %377 = vmatprep.subr.mxu0 0.0
    %378 = vmatpush1.msra.mxu0 0.0
    %379 = vmatprep.subr.mxu0 0.0
    %380 = vmatpush1.msra.mxu0 0.0
    %381 = vmatprep.subr.mxu0 0.0
    %382 = vmatpush1.msra.mxu0 %v342
    %383 = vmatprep.subr.mxu0 0.0
    %384 = vmatpush1.msra.mxu0 %v341
    %385 = vmatprep.subr.mxu0 0.0
    %386 = vmatpush2.msra.mxu0 0.0
    %387 = vmatprep.subr.mxu0 0.0
    %388 = vmatpush2.msra.mxu0 0.0
    %389 = vmatprep.subr.mxu0 0.0
    %390 = vmatpush2.msra.mxu0 0.0
    %391 = vmatprep.subr.mxu0 0.0
    %392 = vmatpush2.msra.mxu0 0.0
    %393 = vmatprep.subr.mxu0 0.0
    %394 = vmatpush2.msra.mxu0 0.0
    %395 = vmatprep.subr.mxu0 0.0
    %396 = vmatpush2.msra.mxu0 0.0
    %397 = vmatprep.subr.mxu0 0.0
    %398 = vmatpush2.msra.mxu0 0.0
    %399 = vmatprep.subr.mxu0 0.0
    %400 = vmatpush2.msra.mxu0 0.0
    %401 = vmatprep.subr.mxu0 0.0
    %402 = vmatpush2.msra.mxu0 0.0
    %403 = vmatprep.subr.mxu0 0.0
    %404 = vmatpush2.msra.mxu0 0.0
    %405 = vmatprep.subr.mxu0 0.0
    %406 = vmatpush2.msra.mxu0 0.0
    %407 = vmatprep.subr.mxu0 0.0
    %408 = vmatpush2.msra.mxu0 0.0
    %409 = vmatprep.subr.mxu0 0.0
    %410 = vmatpush2.msra.mxu0 0.0
    %411 = vmatprep.subr.mxu0 0.0
    %412 = vmatpush2.msra.mxu0 0.0
    %413 = vmatprep.subr.mxu0 0.0
    %414 = vmatpush2.msra.mxu0 0.0
    %415 = vmatprep.subr.mxu0 0.0
    %416 = vmatpush2.msra.mxu0 0.0
    %417 = vmatprep.mubr.f32.mxu0 0.0
    %418 = vmatmul.mubr.f32.gmra.mxu0 %v351
    %v419 = vpop.f32.mrf.mxu0
    %v420 = vadd.f32 0.0, %v419
    %v421 = vpop.f32.mrf.mxu0
    %422 = vdwg.mxu0
    %v424 = vsel %vm212, %v167, 0
    %v427 = vsel %vm212, %v172, 0
    %429 = vmatprep.subr.mxu0 0.0
    %430 = vmatpush1.msra.mxu0 0.0
    %431 = vmatprep.subr.mxu0 0.0
    %432 = vmatpush1.msra.mxu0 0.0
    %433 = vmatprep.subr.mxu0 0.0
    %434 = vmatpush1.msra.mxu0 0.0
    %435 = vmatprep.subr.mxu0 0.0
    %436 = vmatpush1.msra.mxu0 0.0
    %437 = vmatprep.subr.mxu0 0.0
    %438 = vmatpush1.msra.mxu0 0.0
    %439 = vmatprep.subr.mxu0 0.0
    %440 = vmatpush1.msra.mxu0 0.0
    %441 = vmatprep.subr.mxu0 0.0
    %442 = vmatpush1.msra.mxu0 0.0
    %443 = vmatprep.subr.mxu0 0.0
    %444 = vmatpush1.msra.mxu0 0.0
    %445 = vmatprep.subr.mxu0 0.0
    %446 = vmatpush1.msra.mxu0 0.0
    %447 = vmatprep.subr.mxu0 0.0
    %448 = vmatpush1.msra.mxu0 0.0
    %449 = vmatprep.subr.mxu0 0.0
    %450 = vmatpush1.msra.mxu0 0.0
    %451 = vmatprep.subr.mxu0 0.0
    %452 = vmatpush1.msra.mxu0 0.0
    %453 = vmatprep.subr.mxu0 0.0
    %454 = vmatpush1.msra.mxu0 %v346
    %455 = vmatprep.subr.mxu0 0.0
    %456 = vmatpush1.msra.mxu0 %v345
    %457 = vmatprep.subr.mxu0 0.0
    %458 = vmatpush1.msra.mxu0 %v344
    %459 = vmatprep.subr.mxu0 0.0
    %460 = vmatpush1.msra.mxu0 %v343
    %461 = vmatprep.subr.mxu0 0.0
    %462 = vmatpush2.msra.mxu0 0.0
    %463 = vmatprep.subr.mxu0 0.0
    %464 = vmatpush2.msra.mxu0 0.0
    %465 = vmatprep.subr.mxu0 0.0
    %466 = vmatpush2.msra.mxu0 0.0
    %467 = vmatprep.subr.mxu0 0.0
    %468 = vmatpush2.msra.mxu0 0.0
    %469 = vmatprep.subr.mxu0 0.0
    %470 = vmatpush2.msra.mxu0 0.0
    %471 = vmatprep.subr.mxu0 0.0
    %472 = vmatpush2.msra.mxu0 0.0
    %473 = vmatprep.subr.mxu0 0.0
    %474 = vmatpush2.msra.mxu0 0.0
    %475 = vmatprep.subr.mxu0 0.0
    %476 = vmatpush2.msra.mxu0 0.0
    %477 = vmatprep.subr.mxu0 0.0
    %478 = vmatpush2.msra.mxu0 0.0
    %479 = vmatprep.subr.mxu0 0.0
    %480 = vmatpush2.msra.mxu0 0.0
    %481 = vmatprep.subr.mxu0 0.0
    %482 = vmatpush2.msra.mxu0 0.0
    %483 = vmatprep.subr.mxu0 0.0
    %484 = vmatpush2.msra.mxu0 0.0
    %485 = vmatprep.subr.mxu0 0.0
    %486 = vmatpush2.msra.mxu0 0.0
    %487 = vmatprep.subr.mxu0 0.0
    %488 = vmatpush2.msra.mxu0 0.0
    %489 = vmatprep.subr.mxu0 0.0
    %490 = vmatpush2.msra.mxu0 0.0
    %491 = vmatprep.subr.mxu0 0.0
    %492 = vmatpush2.msra.mxu0 0.0
    %493 = vmatprep.mubr.f32.mxu0 0.0
    %494 = vmatmul.mubr.f32.gmra.mxu0 %v424
    %v495 = vpop.f32.mrf.mxu0
    %v496 = vadd.f32 0.0, %v495
    %v497 = vpop.f32.mrf.mxu0
    %498 = vmatprep.mubr.f32.mxu0 0.0
    %499 = vmatmul.mubr.f32.gmra.mxu0 %v427
    %v500 = vpop.f32.mrf.mxu0
    %v501 = vadd.f32 0.0, %v500
    %v502 = vpop.f32.mrf.mxu0
    %503 = vdwg.mxu0
    %v506 = vunpack.c.l.s4 1966171168
    %v507 = vunpack.c.0.s8 %v506
    %v508 = vlaneseq
    %v509 = vshrl.u32 %v508, 7
    %v510 = vsub.s32 %v507, %v509
    %v511 = vrot.slane %v420, %v510
    %v512 = vcombine.high %v511, %v511
    %v514 = vunpack.c.l.s4 1966171168
    %v515 = vunpack.c.0.s8 %v514
    %v516 = vlaneseq
    %v517 = vshrl.u32 %v516, 7
    %v518 = vsub.s32 %v515, %v517
    %v519 = vrot.slane %v511, %v518
    %v521 = vunpack.c.l.s4 1966171168
    %v522 = vunpack.c.0.s8 %v521
    %v523 = vlaneseq
    %v524 = vshrl.u32 %v523, 7
    %v525 = vsub.s32 %v522, %v524
    %v526 = vrot.slane %v512, %v525
    %v527 = vlaneseq
    %v528 = vshrl.u32 %v527, 7
    %v529 = vsub.s32 0, %v528
    %v530 = vrot.slane %v519, %v529
    %v531 = vlaneseq
    %v532 = vshrl.u32 %v531, 7
    %v533 = vsub.s32 0, %v532
    %v534 = vrot.slane %v526, %v533
    %v537 = vadd.f32 %v530, %v496
    %v538 = vadd.f32 %v534, %v501
    %v539 = vld [vmem:[%s6] sm:$0x1]
    %v541 = vlaneseq
    %v542 = vshrl.u32 %v541, 7
    %v543 = vsub.s32 0, %v542
    %v544 = vrot.slane %v539, %v543
    %v546 = vadd.f32 %v537, %v544
    %v547 = vadd.f32 %v538, %v544
    %v548 = vtanh.pop %v546
    %v549 = vtanh.pop %v547
    %v550 = vld [vmem:[%s7] sm:$0x1]
    %v552 = vlaneseq
    %v553 = vshrl.u32 %v552, 7
    %v554 = vsub.s32 0, %v553
    %v555 = vrot.slane %v550, %v554
    %v557 = vmul.f32 %v548, %v555
    %v558 = vmul.f32 %v549, %v555
    %v559 = vsel %vm326, %v557, 0.0
    %560 = vadd.xlane.f32.xlu0 %v559
    %v561 = vpop.xlane.xlu0 %560
    %v562 = vsel %vm326, %v558, 0.0
    %563 = vadd.xlane.f32.xlu0 %v562
    %v564 = vpop.xlane.xlu0 %563
    %v567 = vlaneseq
    %v568 = vshrl.u32 %v567, 7
    %v569 = vsub.s32 %v44, %v568
    %v570 = vrot.slane %v561, %v569
    %v571 = vlaneseq
    %v572 = vshrl.u32 %v571, 7
    %v573 = vsub.s32 %v44, %v572
    %v574 = vrot.slane %v564, %v573
    %v575 = vsel %vm349, %v574, %v570
    %vm577 = vcmask 58368
    %v578 = vsel %vm577, %v575, -inf
    %579 = vmax.xlane.f32.xlu0 %v578
    %v580 = vpop.xlane.xlu0 %579
    %v582 = vlaneseq
    %v583 = vshrl.u32 %v582, 7
    %v584 = vsub.s32 0, %v583
    %v585 = vrot.slane %v580, %v584
    %v586 = vlaneseq
    %v587 = vshrl.u32 %v586, 7
    %v588 = vsub.s32 1, %v587
    %v589 = vrot.slane %v580, %v588
    %v592 = vsub.f32 %v561, %v585
    %v593 = vsub.f32 %v564, %v589
    %v594 = vmul.f32 %v592, 1.442695
    %v595 = vpow.pop %v594
    %v596 = vmul.f32 %v593, 1.442695
    %v597 = vpow.pop %v596
    %600 = vset.pattern.permute.xlu0 0
    %601 = vperm.xlu0 %600, %v595
    %v602 = vpop.permute.xlu0 %601
    %603 = vset.pattern.permute.xlu0 0
    %604 = vperm.xlu0 %603, %v597
    %v605 = vpop.permute.xlu0 %604
    %v606 = vlaneseq
    %v607 = vshrl.u32 %v606, 7
    %v608 = vsub.s32 %v44, %v607
    %v609 = vrot.slane %v602, %v608
    %v610 = vlaneseq
    %v611 = vshrl.u32 %v610, 7
    %v612 = vsub.s32 %v44, %v611
    %v613 = vrot.slane %v605, %v612
    %v614 = vsel %vm349, %v613, %v609
    %v616 = vsel %vm577, %v614, 0.0
    %617 = vadd.xlane.f32.xlu0 %v616
    %v618 = vpop.xlane.xlu0 %617
    %v619 = vrcp.pop %v618
    %v621 = vlaneseq
    %v622 = vshrl.u32 %v621, 7
    %v623 = vsub.s32 0, %v622
    %v624 = vrot.slane %v619, %v623
    %v625 = vlaneseq
    %v626 = vshrl.u32 %v625, 7
    %v627 = vsub.s32 1, %v626
    %v628 = vrot.slane %v619, %v627
    %v631 = vmul.f32 %v595, %v624
    %v632 = vmul.f32 %v597, %v628
    %v634 = vlaneseq
    %v635 = vshrl.u32 %v634, 7
    %v636 = vsub.s32 0, %v635
    %v637 = vrot.slane %v179, %v636
    %639 = vbcast.lane.b32.xlu0 %v637, 256
    %v640 = vpop.permute.xlu0 %639
    %v641 = vlaneseq
    %v642 = vshrl.u32 %v641, 7
    %v643 = vsub.s32 1, %v642
    %v644 = vrot.slane %v179, %v643
    %646 = vbcast.lane.b32.xlu0 %v644, 256
    %v647 = vpop.permute.xlu0 %646
    %v650 = vmul.f32 %v631, %v640
    %v651 = vmul.f32 %v632, %v647
    %654 = vset.pattern.permute.xlu0 0
    %655 = vperm.xlu0 %654, %v650
    %v656 = vpop.permute.xlu0 %655
    %657 = vset.pattern.permute.xlu0 0
    %658 = vperm.xlu0 %657, %v651
    %v659 = vpop.permute.xlu0 %658
    %v660 = vlaneseq
    %v661 = vshrl.u32 %v660, 7
    %v662 = vsub.s32 %v44, %v661
    %v663 = vrot.slane %v656, %v662
    %v664 = vlaneseq
    %v665 = vshrl.u32 %v664, 7
    %v666 = vsub.s32 %v44, %v665
    %v667 = vrot.slane %v659, %v666
    %v668 = vsel %vm349, %v667, %v663
    %670 = vst.msk [vmem:[#allocation2] sm:$0x3] %vm577, %v668
    %vm671 = vcmp.gt.f32.partialorder %v650, 0.0
    %vm672 = vcmp.gt.f32.partialorder %v651, 0.0
    %v673 = vlog2.pop %v650
    %v674 = vmul.f32 %v673, 0.6931472
    %v675 = vlog2.pop %v651
    %v676 = vmul.f32 %v675, 0.6931472
    %v677 = vmul.f32 %v650, %v674
    %v678 = vmul.f32 %v651, %v676
    %v679 = vsel %vm671, %v677, 0.0
    %v680 = vsel %vm672, %v678, 0.0
    %683 = vset.pattern.permute.xlu0 0
    %684 = vperm.xlu0 %683, %v679
    %v685 = vpop.permute.xlu0 %684
    %686 = vset.pattern.permute.xlu0 0
    %687 = vperm.xlu0 %686, %v680
    %v688 = vpop.permute.xlu0 %687
    %v689 = vlaneseq
    %v690 = vshrl.u32 %v689, 7
    %v691 = vsub.s32 %v44, %v690
    %v692 = vrot.slane %v685, %v691
    %v693 = vlaneseq
    %v694 = vshrl.u32 %v693, 7
    %v695 = vsub.s32 %v44, %v694
    %v696 = vrot.slane %v688, %v695
    %v697 = vsel %vm349, %v696, %v692
    %v699 = vsel %vm577, %v697, 0.0
    %700 = vadd.xlane.f32.xlu0 %v699
    %v701 = vpop.xlane.xlu0 %700
    %v702 = vsub.f32 0.0, %v701
    %vm703 = vcmask 1024
    %704 = vst.msk [vmem:[%s11] sm:$0x3] %vm703, %v702
    %v705 = vsel %vm577, %v668, -inf
    %706 = vmax.xlane.f32.xlu0 %v705
    %v707 = vpop.xlane.xlu0 %706
    %v709 = vlaneseq
    %v710 = vshrl.u32 %v709, 7
    %v711 = vsub.s32 0, %v710
    %v712 = vrot.slane %v707, %v711
    %v713 = vlaneseq
    %v714 = vshrl.u32 %v713, 7
    %v715 = vsub.s32 1, %v714
    %v716 = vrot.slane %v707, %v715
    %vm719 = vcmp.eq.f32.partialorder %v650, %v712
    %vm720 = vcmp.eq.f32.partialorder %v651, %v716
    %722 = vbcast.lane.b32.xlu0 %v44, 256
    %v723 = vpop.permute.xlu0 %722
    %v724 = vsel %vm719, %v723, 8
    %v725 = vsel %vm720, %v723, 8
    %726 = vset.pattern.permute.xlu0 0
    %727 = vperm.xlu0 %726, %v724
    %v728 = vpop.permute.xlu0 %727
    %729 = vset.pattern.permute.xlu0 0
    %730 = vperm.xlu0 %729, %v725
    %v731 = vpop.permute.xlu0 %730
    %v732 = vlaneseq
    %v733 = vshrl.u32 %v732, 7
    %v734 = vsub.s32 %v44, %v733
    %v735 = vrot.slane %v728, %v734
    %v736 = vlaneseq
    %v737 = vshrl.u32 %v736, 7
    %v738 = vsub.s32 %v44, %v737
    %v739 = vrot.slane %v731, %v738
    %v740 = vsel %vm349, %v739, %v735
    %v741 = vsel %vm577, %v740, 2147483647
    %v742 = vand.u32 %v741, 65535
    %v743 = vshra.s32 %v741, 16
    %v744 = vcvt.s32.f32 %v742
    %v745 = vcvt.s32.f32 %v743
    %746 = vmin.xlane.f32.xlu0 %v745
    %v747 = vpop.xlane.xlu0 %746
    %vm748 = vcmp.eq.f32.partialorder %v745, %v747
    %v749 = vsel %vm748, %v744, inf
    %750 = vmin.xlane.f32.xlu0 %v749
    %v751 = vpop.xlane.xlu0 %750
    %v752 = vcvt.f32.s32 %v751
    %v753 = vcvt.f32.s32 %v747
    %v754 = vshll.u32 %v753, 16
    %v755 = vadd.s32 %v754, %v752
    %vm756 = vcmp.eq.s32.totalorder %v44, %v755
    %v757 = vsel %vm756, %v175, 0
    %v758 = vsel %vm577, %v757, 0
    %v759 = vand.u32 %v758, 65535
    %v760 = vshrl.u32 %v758, 16
    %v761 = vcvt.s32.f32 %v759
    %v762 = vcvt.s32.f32 %v760
    %763 = vadd.xlane.f32.xlu0 %v761
    %v764 = vpop.xlane.xlu0 %763
    %765 = vadd.xlane.f32.xlu0 %v762
    %v766 = vpop.xlane.xlu0 %765
    %v767 = vcvt.f32.s32 %v764
    %v768 = vcvt.f32.s32 %v766
    %v769 = vshll.u32 %v768, 16
    %v770 = vadd.s32 %v769, %v767
    %v771 = vsel %vm756, -1.0, %v668
    %v772 = vsel %vm577, %v771, -inf
    %773 = vmax.xlane.f32.xlu0 %v772
    %v774 = vpop.xlane.xlu0 %773
    %vm775 = vcmp.eq.f32.partialorder %v771, %v774
    %v776 = vsel %vm775, %v44, 8
    %v777 = vsel %vm577, %v776, 2147483647
    %v778 = vand.u32 %v777, 65535
    %v779 = vshra.s32 %v777, 16
    %v780 = vcvt.s32.f32 %v778
    %v781 = vcvt.s32.f32 %v779
    %782 = vmin.xlane.f32.xlu0 %v781
    %v783 = vpop.xlane.xlu0 %782
    %vm784 = vcmp.eq.f32.partialorder %v781, %v783
    %v785 = vsel %vm784, %v780, inf
    %786 = vmin.xlane.f32.xlu0 %v785
    %v787 = vpop.xlane.xlu0 %786
    %v788 = vcvt.f32.s32 %v787
    %v789 = vcvt.f32.s32 %v783
    %v790 = vshll.u32 %v789, 16
    %v791 = vadd.s32 %v790, %v788
    %vm792 = vcmp.eq.s32.totalorder %v44, %v791
    %v793 = vsel %vm792, %v175, 0
    %v794 = vsel %vm577, %v793, 0
    %v795 = vand.u32 %v794, 65535
    %v796 = vshrl.u32 %v794, 16
    %v797 = vcvt.s32.f32 %v795
    %v798 = vcvt.s32.f32 %v796
    %799 = vadd.xlane.f32.xlu0 %v797
    %v800 = vpop.xlane.xlu0 %799
    %801 = vadd.xlane.f32.xlu0 %v798
    %v802 = vpop.xlane.xlu0 %801
    %v803 = vcvt.f32.s32 %v800
    %v804 = vcvt.f32.s32 %v802
    %v805 = vshll.u32 %v804, 16
    %v806 = vadd.s32 %v805, %v803
    %v807 = vsel %vm792, -1.0, %v771
    %v808 = vsel %vm577, %v807, -inf
    %809 = vmax.xlane.f32.xlu0 %v808
    %v810 = vpop.xlane.xlu0 %809
    %vm811 = vcmp.eq.f32.partialorder %v807, %v810
    %v812 = vsel %vm811, %v44, 8
    %v813 = vsel %vm577, %v812, 2147483647
    %v814 = vand.u32 %v813, 65535
    %v815 = vshra.s32 %v813, 16
    %v816 = vcvt.s32.f32 %v814
    %v817 = vcvt.s32.f32 %v815
    %818 = vmin.xlane.f32.xlu0 %v817
    %v819 = vpop.xlane.xlu0 %818
    %vm820 = vcmp.eq.f32.partialorder %v817, %v819
    %v821 = vsel %vm820, %v816, inf
    %822 = vmin.xlane.f32.xlu0 %v821
    %v823 = vpop.xlane.xlu0 %822
    %v824 = vcvt.f32.s32 %v823
    %v825 = vcvt.f32.s32 %v819
    %v826 = vshll.u32 %v825, 16
    %v827 = vadd.s32 %v826, %v824
    %vm828 = vcmp.eq.s32.totalorder %v44, %v827
    %v829 = vsel %vm828, %v175, 0
    %v830 = vsel %vm577, %v829, 0
    %v831 = vand.u32 %v830, 65535
    %v832 = vshrl.u32 %v830, 16
    %v833 = vcvt.s32.f32 %v831
    %v834 = vcvt.s32.f32 %v832
    %835 = vadd.xlane.f32.xlu0 %v833
    %v836 = vpop.xlane.xlu0 %835
    %837 = vadd.xlane.f32.xlu0 %v834
    %v838 = vpop.xlane.xlu0 %837
    %v839 = vcvt.f32.s32 %v836
    %v840 = vcvt.f32.s32 %v838
    %v841 = vshll.u32 %v840, 16
    %v842 = vadd.s32 %v841, %v839
    %vm843 = vcmask 7168
    %v844 = vsel %vm843, %v707, %v774
    %vm845 = vcmask 15360
    %v846 = vsel %vm845, %v844, %v810
    %vm847 = vcmask 17408
    %848 = vst.msk [vmem:[#allocation4] sm:$0x3] %vm847, %v846
    %v849 = vsel %vm843, %v770, %v806
    %v850 = vsel %vm845, %v849, %v842
    %851 = vst.msk [vmem:[#allocation6] sm:$0x3] %vm847, %v850
    // Predicated region
    $region34: #{knowledge_agent_forward.1} parent=1 // pred_check
      _
    $region35: #{knowledge_agent_forward.1} parent=1 // pred_check_branch
      %853 = sbr.rel (0) target = $region37
    $region36: #{knowledge_agent_forward.1} parent=1 // pred_region
      %s855 = ssub.s32 32, 32
      %856 = vsyncadd [#allocation3], %s855
      %s858 = sshll.u32 [#allocation2], 4
      %s859 = int_to_ptr.vmem [resolvable:$true] %s858
      %861 = dma.vmem_to_hbm [thread:$0]  %s859, 32, %s8, [#allocation3]
    $region37: #{knowledge_agent_forward.1} parent=1 // pred_fallthru
      _
    // Predicated region
    $region38: #{knowledge_agent_forward.1} parent=1 // pred_check
      _
    $region39: #{knowledge_agent_forward.1} parent=1 // pred_check_branch
      %863 = sbr.rel (0) target = $region41
    $region40: #{knowledge_agent_forward.1} parent=1 // pred_region
      %s865 = ssub.s32 32, 32
      %866 = vsyncadd [#allocation5], %s865
      %s868 = sshll.u32 [#allocation4], 4
      %s869 = int_to_ptr.vmem [resolvable:$true] %s868
      %871 = dma.vmem_to_hbm [thread:$0]  %s869, 32, %s9, [#allocation5]
    $region41: #{knowledge_agent_forward.1} parent=1 // pred_fallthru
      _
    // Predicated region
    $region42: #{knowledge_agent_forward.1} parent=1 // pred_check
      _
    $region43: #{knowledge_agent_forward.1} parent=1 // pred_check_branch
      %873 = sbr.rel (0) target = $region45
    $region44: #{knowledge_agent_forward.1} parent=1 // pred_region
      %s875 = ssub.s32 32, 32
      %876 = vsyncadd [#allocation5], %s875
      %s878 = sshll.u32 [#allocation6], 4
      %s879 = int_to_ptr.vmem [resolvable:$true] %s878
      %881 = dma.vmem_to_hbm [thread:$0]  %s879, 32, %s10, [#allocation5]
    $region45: #{knowledge_agent_forward.1} parent=1 // pred_fallthru
      _
    // Predicated region
    $region46: #{knowledge_agent_forward.1} parent=1 // pred_check
      _
    $region47: #{knowledge_agent_forward.1} parent=1 // pred_check_branch
      %883 = sbr.rel (0) target = $region49
    $region48: #{knowledge_agent_forward.1} parent=1 // pred_region
      _
    $region49: #{knowledge_agent_forward.1} parent=1 // pred_fallthru
      _
    // Predicated region
    $region50: #{knowledge_agent_forward.1} parent=1 // pred_check
      _
    $region51: #{knowledge_agent_forward.1} parent=1 // pred_check_branch
      %885 = sbr.rel (0) target = $region53
    $region52: #{knowledge_agent_forward.1} parent=1 // pred_region
      %886 = dma.done [#allocation3], 32
    $region53: #{knowledge_agent_forward.1} parent=1 // pred_fallthru
      _
    // Predicated region
    $region54: #{knowledge_agent_forward.1} parent=1 // pred_check
      _
    $region55: #{knowledge_agent_forward.1} parent=1 // pred_check_branch
      %888 = sbr.rel (0) target = $region57
    $region56: #{knowledge_agent_forward.1} parent=1 // pred_region
      %889 = dma.done [#allocation5], 32
    $region57: #{knowledge_agent_forward.1} parent=1 // pred_fallthru
      _
    // Predicated region
    $region58: #{knowledge_agent_forward.1} parent=1 // pred_check
      _
    $region59: #{knowledge_agent_forward.1} parent=1 // pred_check_branch
      %891 = sbr.rel (0) target = $region61
    $region60: #{knowledge_agent_forward.1} parent=1 // pred_region
      %892 = dma.done [#allocation5], 32
    $region61: #{knowledge_agent_forward.1} parent=1 // pred_fallthru
      _
    // Predicated region
    $region62: #{knowledge_agent_forward.1} parent=1 // pred_check
      _
    $region63: #{knowledge_agent_forward.1} parent=1 // pred_check_branch
      %894 = sbr.rel (0) target = $region65
    $region64: #{knowledge_agent_forward.1} parent=1 // pred_region
      _
    $region65: #{knowledge_agent_forward.1} parent=1 // pred_fallthru
      _
    %895 = vsyncpa [#allocation3], 1
    %896 = vsyncpa [#allocation5], 1

</llo_original>
